<compile_context>
chip_gen: v7x
topology: tpu7x:2x2x1
jax: 0.10.0
libtpu: 0.0.40
codegen_flags: <defaults>
</compile_context>

<pallas_src>
import functools

import jax
import jax.numpy as jnp
from jax.experimental import pallas as pl
from jax.experimental.pallas import tpu as pltpu


# ----------------------------------------------------------------------------
# Fused Decoder2 kernel: n x (GraphConv -> +b -> PReLU -> BN -> PReLU) -> L2 norm
# ----------------------------------------------------------------------------
def _decoder2_kernel(a_ref, x_ref, w_ref, b_ref, g_ref, be_ref, pc_ref, pa_ref,
                     out_ref, *, n_real, n_layers, eps):
    a = a_ref[...]                                   # (Npad, Npad) adjacency
    npad = a.shape[0]

    # Rows >= n_real are zero padding; keep them zero so BatchNorm statistics
    # (computed over the real n_real nodes) are exact.
    row_mask = (jax.lax.broadcasted_iota(jnp.int32, (npad, 1), 0)
                < n_real).astype(jnp.float32)
    inv_n = jnp.float32(1.0 / n_real)

    h = x_ref[...]                                   # (Npad, Fpad)

    for l in range(n_layers):                        # static unroll (n is small)
        # GraphConv, norm='none':  A @ (h W) + b
        xw = jnp.dot(h, w_ref[l], preferred_element_type=jnp.float32)
        hc = jnp.dot(a, xw, preferred_element_type=jnp.float32) + b_ref[l]
        # GraphConv activation: PReLU (slope pre-broadcast to (1, Fpad))
        hc = jnp.where(hc >= 0.0, hc, pc_ref[l] * hc)
        hc = hc * row_mask                           # padded rows -> 0 for BN

        # BatchNorm1d, training-mode (biased variance), eps = 1e-5
        mean = jnp.sum(hc, axis=0, keepdims=True) * inv_n
        cent = hc - mean
        var = jnp.sum(cent * cent * row_mask, axis=0, keepdims=True) * inv_n
        hb = g_ref[l] * (cent * jax.lax.rsqrt(var + eps)) + be_ref[l]

        # Outer PReLU
        h = jnp.where(hb >= 0.0, hb, pa_ref[l] * hb)
        h = h * row_mask

    # F.normalize (p=2, dim=-1, eps=1e-12); padded feature columns are zero so
    # the norm over Fpad equals the norm over the real features.
    norm = jnp.sqrt(jnp.sum(h * h, axis=-1, keepdims=True))
    out_ref[...] = h / jnp.maximum(norm, 1e-12)


# ----------------------------------------------------------------------------
# Plain-JAX glue: dropout, parameter packing / padding, pallas_call wrapper
# ----------------------------------------------------------------------------
def dropout(key, x, p):
    if p <= 0.0:
        return x
    keep = jax.random.bernoulli(key, 1.0 - p, x.shape)
    return jnp.where(keep, x / (1.0 - p), 0.0)


def init_decoder2(key, in_hidden, out_hidden, n):
    """Per-layer params matching Decoder2 (GraphConv + BatchNorm + 2x PReLU)."""
    keys = jax.random.split(key, n)
    layers = []
    fin = in_hidden
    for k in keys:
        w = jax.random.normal(k, (fin, out_hidden), jnp.float32) / jnp.sqrt(fin)
        layers.append(dict(
            w=w,
            b=jnp.zeros((out_hidden,), jnp.float32),
            gamma=jnp.ones((out_hidden,), jnp.float32),
            beta=jnp.zeros((out_hidden,), jnp.float32),
            prelu_conv=jnp.float32(0.25),     # PReLU inside GraphConv
            prelu_act=jnp.float32(0.25),      # outer PReLU
        ))
        fin = out_hidden
    return layers


def _pack_params(layers, fpad):
    """Stack + zero-pad per-layer params to lane-dense (L, ..., fpad) arrays."""
    n_layers = len(layers)
    w = jnp.zeros((n_layers, fpad, fpad), jnp.float32)
    b = jnp.zeros((n_layers, 1, fpad), jnp.float32)
    g = jnp.zeros((n_layers, 1, fpad), jnp.float32)
    be = jnp.zeros((n_layers, 1, fpad), jnp.float32)
    pc = jnp.zeros((n_layers, 1, fpad), jnp.float32)
    pa = jnp.zeros((n_layers, 1, fpad), jnp.float32)
    for i, lyr in enumerate(layers):
        fi, fo = lyr["w"].shape
        w = w.at[i, :fi, :fo].set(lyr["w"])
        b = b.at[i, 0, :fo].set(lyr["b"])
        g = g.at[i, 0, :fo].set(lyr["gamma"])
        be = be.at[i, 0, :fo].set(lyr["beta"])
        # pre-broadcast the PReLU scalars once (hoisted out of the kernel loop)
        pc = pc.at[i, 0, :].set(lyr["prelu_conv"])
        pa = pa.at[i, 0, :].set(lyr["prelu_act"])
    return w, b, g, be, pc, pa


def decoder2_forward(layers, adjacency, heat, key, p_drop, out_hidden):
    """Batched Decoder2 forward.

    adjacency: (B, N, N) dense adjacency (norm='none' -> used as-is)
    heat:      (B, N, in_hidden) node features
    returns    (B, N, out_hidden) L2-normalized node embeddings
    """
    b_graphs, n_nodes, fin = heat.shape
    n_layers = len(layers)

    npad = 8 * pl.cdiv(n_nodes, 8)                       # sublane multiple
    fpad = 128 * pl.cdiv(max(fin, out_hidden), 128)      # lane-dense features

    x = dropout(key, heat, p_drop)
    x = jnp.pad(x, ((0, 0), (0, npad - n_nodes), (0, fpad - fin)))
    a = jnp.pad(adjacency, ((0, 0), (0, npad - n_nodes), (0, npad - n_nodes)))

    w, b, g, be, pc, pa = _pack_params(layers, fpad)

    kernel = functools.partial(_decoder2_kernel, n_real=n_nodes,
                               n_layers=n_layers, eps=1e-5)

    flops_per_graph = n_layers * (2 * npad * fpad * fpad      # h @ W
                                  + 2 * npad * npad * fpad    # A @ (hW)
                                  + 12 * npad * fpad)         # bias/PReLU/BN
    trans_per_graph = n_layers * fpad + npad                  # rsqrt + sqrt
    bytes_accessed = (b_graphs * (npad * npad + 2 * npad * fpad) * 4
                      + (n_layers * fpad * fpad + 5 * n_layers * fpad) * 4)
    cost = pl.CostEstimate(flops=int(b_graphs * flops_per_graph),
                           transcendentals=int(b_graphs * trans_per_graph),
                           bytes_accessed=int(bytes_accessed))

    const_map = lambda bi: (0, 0, 0)      # params: resident across grid steps
    per_graph = lambda bi: (bi, 0, 0)     # A / X / out: one block per graph

    out = pl.pallas_call(
        kernel,
        out_shape=jax.ShapeDtypeStruct((b_graphs, npad, fpad), jnp.float32),
        grid=(b_graphs,),
        in_specs=[
            pl.BlockSpec((None, npad, npad), per_graph),        # A (squeezed)
            pl.BlockSpec((None, npad, fpad), per_graph),        # X (squeezed)
            pl.BlockSpec((n_layers, fpad, fpad), const_map),    # W stack
            pl.BlockSpec((n_layers, 1, fpad), const_map),       # bias
            pl.BlockSpec((n_layers, 1, fpad), const_map),       # gamma
            pl.BlockSpec((n_layers, 1, fpad), const_map),       # beta
            pl.BlockSpec((n_layers, 1, fpad), const_map),       # conv PReLU slope
            pl.BlockSpec((n_layers, 1, fpad), const_map),       # outer PReLU slope
        ],
        out_specs=pl.BlockSpec((None, npad, fpad), per_graph),
        compiler_params=pltpu.CompilerParams(
            dimension_semantics=("parallel",)),
        cost_estimate=cost,
    )(a, x, w, b, g, be, pc, pa)

    return out[:, :n_nodes, :out_hidden]


# ----------------------------------------------------------------------------
if __name__ == "__main__":
    key = jax.random.PRNGKey(0)
    B, N = 4, 32                 # batch of graphs, nodes per graph
    IN_H, OUT_H = 32, 16         # Decoder2(in_hidden=32, out_hidden=16, n=2, p=0.1)
    N_LAYERS, P_DROP = 2, 0.1

    ka, kh, kp, kd = jax.random.split(key, 4)

    # random symmetric adjacency with self loops, per graph
    upper = jax.random.bernoulli(ka, 0.3, (B, N, N)).astype(jnp.float32)
    upper = jnp.triu(upper, 1)
    adjacency = upper + jnp.swapaxes(upper, 1, 2) + jnp.eye(N, dtype=jnp.float32)

    heat = jax.random.normal(kh, (B, N, IN_H), jnp.float32)   # decoder input

    layers = init_decoder2(kp, IN_H, OUT_H, N_LAYERS)

    out = decoder2_forward(layers, adjacency, heat, kd, P_DROP, OUT_H)
    jax.block_until_ready(out)

    assert out.shape == (B, N, OUT_H)
    assert bool(jnp.all(jnp.isfinite(out)))
    row_norms = jnp.linalg.norm(out, axis=-1)
    assert bool(jnp.all(row_norms <= 1.0 + 1e-4))   # F.normalize output
    print("KERNEL_OK")
</pallas_src>

<mosaic_0001>
module attributes {stable_mosaic.version = 11 : i64} {
  func.func @_decoder2_kernel(%arg0: i32, %arg1: memref<1x32x32xf32, #tpu.memory_space<vmem>>, %arg2: memref<1x32x128xf32, #tpu.memory_space<vmem>>, %arg3: memref<2x128x128xf32, #tpu.memory_space<vmem>>, %arg4: memref<2x1x128xf32, #tpu.memory_space<vmem>>, %arg5: memref<2x1x128xf32, #tpu.memory_space<vmem>>, %arg6: memref<2x1x128xf32, #tpu.memory_space<vmem>>, %arg7: memref<2x1x128xf32, #tpu.memory_space<vmem>>, %arg8: memref<2x1x128xf32, #tpu.memory_space<vmem>>, %arg9: memref<1x32x128xf32, #tpu.memory_space<vmem>>) attributes {dimension_semantics = [#tpu.dimension_semantics<parallel>], iteration_bounds = array<i64: 4>, scalar_prefetch = 0 : i64, scratch_operands = 0 : i64, tpu.core_type = #tpu.core_type<tc>, window_params = [{transform_indices = @transform_0, window_bounds = array<i64: 1, 32, 32>}, {transform_indices = @transform_1, window_bounds = array<i64: 1, 32, 128>}, {pipeline_mode = #tpu.pipeline_mode<synchronous>, transform_indices = @transform_2, window_bounds = array<i64: 2, 128, 128>}, {pipeline_mode = #tpu.pipeline_mode<synchronous>, transform_indices = @transform_3, window_bounds = array<i64: 2, 1, 128>}, {pipeline_mode = #tpu.pipeline_mode<synchronous>, transform_indices = @transform_4, window_bounds = array<i64: 2, 1, 128>}, {pipeline_mode = #tpu.pipeline_mode<synchronous>, transform_indices = @transform_5, window_bounds = array<i64: 2, 1, 128>}, {pipeline_mode = #tpu.pipeline_mode<synchronous>, transform_indices = @transform_6, window_bounds = array<i64: 2, 1, 128>}, {pipeline_mode = #tpu.pipeline_mode<synchronous>, transform_indices = @transform_7, window_bounds = array<i64: 2, 1, 128>}, {transform_indices = @transform_8, window_bounds = array<i64: 1, 32, 128>}]} {
    %c0 = arith.constant 0 : index
    %c0_0 = arith.constant 0 : index
    %c0_1 = arith.constant 0 : index
    %0 = vector.load %arg1[%c0, %c0_0, %c0_1] : memref<1x32x32xf32, #tpu.memory_space<vmem>>, vector<1x32x32xf32>
    %1 = vector.shape_cast %0 : vector<1x32x32xf32> to vector<32x32xf32>
    %2 = tpu.iota {dimensions = array<i32: 0>} : vector<32x1xi32>
    %c32_i32 = arith.constant 32 : i32
    %3 = vector.broadcast %c32_i32 : i32 to vector<32x1xi32>
    %4 = arith.cmpi slt, %2, %3 : vector<32x1xi32>
    %5 = arith.extui %4 : vector<32x1xi1> to vector<32x1xi32>
    %6 = arith.sitofp %5 : vector<32x1xi32> to vector<32x1xf32>
    %c0_2 = arith.constant 0 : index
    %c0_3 = arith.constant 0 : index
    %c0_4 = arith.constant 0 : index
    %7 = vector.load %arg2[%c0_2, %c0_3, %c0_4] : memref<1x32x128xf32, #tpu.memory_space<vmem>>, vector<1x32x128xf32>
    %8 = vector.shape_cast %7 : vector<1x32x128xf32> to vector<32x128xf32>
    %c0_5 = arith.constant 0 : index
    %c0_6 = arith.constant 0 : index
    %c0_7 = arith.constant 0 : index
    %9 = vector.load %arg3[%c0_5, %c0_6, %c0_7] : memref<2x128x128xf32, #tpu.memory_space<vmem>>, vector<1x128x128xf32>
    %10 = vector.shape_cast %9 : vector<1x128x128xf32> to vector<128x128xf32>
    %cst = arith.constant dense<0.000000e+00> : vector<32x128xf32>
    %11 = tpu.matmul %8, %10, %cst {dimension_numbers = #tpu.dot_dimension_numbers<[1], [0], [0], [1], [0, 0, 1, 1], [], []>} : vector<32x128xf32>, vector<128x128xf32>, vector<32x128xf32> -> vector<32x128xf32>
    %cst_8 = arith.constant dense<0.000000e+00> : vector<32x128xf32>
    %12 = tpu.matmul %1, %11, %cst_8 {dimension_numbers = #tpu.dot_dimension_numbers<[1], [0], [0], [1], [0, 0, 1, 1], [], []>} : vector<32x32xf32>, vector<32x128xf32>, vector<32x128xf32> -> vector<32x128xf32>
    %c0_9 = arith.constant 0 : index
    %c0_10 = arith.constant 0 : index
    %c0_11 = arith.constant 0 : index
    %13 = vector.load %arg4[%c0_9, %c0_10, %c0_11] : memref<2x1x128xf32, #tpu.memory_space<vmem>>, vector<1x1x128xf32>
    %14 = vector.shape_cast %13 : vector<1x1x128xf32> to vector<1x128xf32>
    %15 = vector.broadcast %14 : vector<1x128xf32> to vector<32x128xf32>
    %16 = arith.addf %12, %15 : vector<32x128xf32>
    %cst_12 = arith.constant 0.000000e+00 : f32
    %17 = vector.broadcast %cst_12 : f32 to vector<32x128xf32>
    %18 = arith.cmpf oge, %16, %17 : vector<32x128xf32>
    %c0_13 = arith.constant 0 : index
    %c0_14 = arith.constant 0 : index
    %c0_15 = arith.constant 0 : index
    %19 = vector.load %arg7[%c0_13, %c0_14, %c0_15] : memref<2x1x128xf32, #tpu.memory_space<vmem>>, vector<1x1x128xf32>
    %20 = vector.shape_cast %19 : vector<1x1x128xf32> to vector<1x128xf32>
    %21 = vector.broadcast %20 : vector<1x128xf32> to vector<32x128xf32>
    %22 = arith.mulf %21, %16 : vector<32x128xf32>
    %23 = arith.select %18, %16, %22 : vector<32x128xi1>, vector<32x128xf32>
    %24 = vector.broadcast %6 : vector<32x1xf32> to vector<32x128xf32>
    %25 = arith.mulf %23, %24 : vector<32x128xf32>
    %cst_16 = arith.constant dense<0.000000e+00> : vector<128xf32>
    %26 = vector.multi_reduction <add>, %25, %cst_16 [0] : vector<32x128xf32> to vector<128xf32>
    %27 = vector.shape_cast %26 : vector<128xf32> to vector<1x128xf32>
    %cst_17 = arith.constant 3.125000e-02 : f32
    %28 = vector.broadcast %cst_17 : f32 to vector<1x128xf32>
    %29 = arith.mulf %27, %28 : vector<1x128xf32>
    %30 = vector.broadcast %29 : vector<1x128xf32> to vector<32x128xf32>
    %31 = arith.subf %25, %30 : vector<32x128xf32>
    %32 = arith.mulf %31, %31 : vector<32x128xf32>
    %33 = vector.broadcast %6 : vector<32x1xf32> to vector<32x128xf32>
    %34 = arith.mulf %32, %33 : vector<32x128xf32>
    %cst_18 = arith.constant dense<0.000000e+00> : vector<128xf32>
    %35 = vector.multi_reduction <add>, %34, %cst_18 [0] : vector<32x128xf32> to vector<128xf32>
    %36 = vector.shape_cast %35 : vector<128xf32> to vector<1x128xf32>
    %cst_19 = arith.constant 3.125000e-02 : f32
    %37 = vector.broadcast %cst_19 : f32 to vector<1x128xf32>
    %38 = arith.mulf %36, %37 : vector<1x128xf32>
    %c0_20 = arith.constant 0 : index
    %c0_21 = arith.constant 0 : index
    %c0_22 = arith.constant 0 : index
    %39 = vector.load %arg5[%c0_20, %c0_21, %c0_22] : memref<2x1x128xf32, #tpu.memory_space<vmem>>, vector<1x1x128xf32>
    %40 = vector.shape_cast %39 : vector<1x1x128xf32> to vector<1x128xf32>
    %cst_23 = arith.constant 9.99999974E-6 : f32
    %41 = vector.broadcast %cst_23 : f32 to vector<1x128xf32>
    %42 = arith.addf %38, %41 : vector<1x128xf32>
    %43 = math.rsqrt %42 : vector<1x128xf32>
    %44 = vector.broadcast %43 : vector<1x128xf32> to vector<32x128xf32>
    %45 = arith.mulf %31, %44 : vector<32x128xf32>
    %46 = vector.broadcast %40 : vector<1x128xf32> to vector<32x128xf32>
    %47 = arith.mulf %46, %45 : vector<32x128xf32>
    %c0_24 = arith.constant 0 : index
    %c0_25 = arith.constant 0 : index
    %c0_26 = arith.constant 0 : index
    %48 = vector.load %arg6[%c0_24, %c0_25, %c0_26] : memref<2x1x128xf32, #tpu.memory_space<vmem>>, vector<1x1x128xf32>
    %49 = vector.shape_cast %48 : vector<1x1x128xf32> to vector<1x128xf32>
    %50 = vector.broadcast %49 : vector<1x128xf32> to vector<32x128xf32>
    %51 = arith.addf %47, %50 : vector<32x128xf32>
    %cst_27 = arith.constant 0.000000e+00 : f32
    %52 = vector.broadcast %cst_27 : f32 to vector<32x128xf32>
    %53 = arith.cmpf oge, %51, %52 : vector<32x128xf32>
    %c0_28 = arith.constant 0 : index
    %c0_29 = arith.constant 0 : index
    %c0_30 = arith.constant 0 : index
    %54 = vector.load %arg8[%c0_28, %c0_29, %c0_30] : memref<2x1x128xf32, #tpu.memory_space<vmem>>, vector<1x1x128xf32>
    %55 = vector.shape_cast %54 : vector<1x1x128xf32> to vector<1x128xf32>
    %56 = vector.broadcast %55 : vector<1x128xf32> to vector<32x128xf32>
    %57 = arith.mulf %56, %51 : vector<32x128xf32>
    %58 = arith.select %53, %51, %57 : vector<32x128xi1>, vector<32x128xf32>
    %59 = vector.broadcast %6 : vector<32x1xf32> to vector<32x128xf32>
    %60 = arith.mulf %58, %59 : vector<32x128xf32>
    %c1 = arith.constant 1 : index
    %c0_31 = arith.constant 0 : index
    %c0_32 = arith.constant 0 : index
    %61 = vector.load %arg3[%c1, %c0_31, %c0_32] : memref<2x128x128xf32, #tpu.memory_space<vmem>>, vector<1x128x128xf32>
    %62 = vector.shape_cast %61 : vector<1x128x128xf32> to vector<128x128xf32>
    %cst_33 = arith.constant dense<0.000000e+00> : vector<32x128xf32>
    %63 = tpu.matmul %60, %62, %cst_33 {dimension_numbers = #tpu.dot_dimension_numbers<[1], [0], [0], [1], [0, 0, 1, 1], [], []>} : vector<32x128xf32>, vector<128x128xf32>, vector<32x128xf32> -> vector<32x128xf32>
    %cst_34 = arith.constant dense<0.000000e+00> : vector<32x128xf32>
    %64 = tpu.matmul %1, %63, %cst_34 {dimension_numbers = #tpu.dot_dimension_numbers<[1], [0], [0], [1], [0, 0, 1, 1], [], []>} : vector<32x32xf32>, vector<32x128xf32>, vector<32x128xf32> -> vector<32x128xf32>
    %c1_35 = arith.constant 1 : index
    %c0_36 = arith.constant 0 : index
    %c0_37 = arith.constant 0 : index
    %65 = vector.load %arg4[%c1_35, %c0_36, %c0_37] : memref<2x1x128xf32, #tpu.memory_space<vmem>>, vector<1x1x128xf32>
    %66 = vector.shape_cast %65 : vector<1x1x128xf32> to vector<1x128xf32>
    %67 = vector.broadcast %66 : vector<1x128xf32> to vector<32x128xf32>
    %68 = arith.addf %64, %67 : vector<32x128xf32>
    %cst_38 = arith.constant 0.000000e+00 : f32
    %69 = vector.broadcast %cst_38 : f32 to vector<32x128xf32>
    %70 = arith.cmpf oge, %68, %69 : vector<32x128xf32>
    %c1_39 = arith.constant 1 : index
    %c0_40 = arith.constant 0 : index
    %c0_41 = arith.constant 0 : index
    %71 = vector.load %arg7[%c1_39, %c0_40, %c0_41] : memref<2x1x128xf32, #tpu.memory_space<vmem>>, vector<1x1x128xf32>
    %72 = vector.shape_cast %71 : vector<1x1x128xf32> to vector<1x128xf32>
    %73 = vector.broadcast %72 : vector<1x128xf32> to vector<32x128xf32>
    %74 = arith.mulf %73, %68 : vector<32x128xf32>
    %75 = arith.select %70, %68, %74 : vector<32x128xi1>, vector<32x128xf32>
    %76 = vector.broadcast %6 : vector<32x1xf32> to vector<32x128xf32>
    %77 = arith.mulf %75, %76 : vector<32x128xf32>
    %cst_42 = arith.constant dense<0.000000e+00> : vector<128xf32>
    %78 = vector.multi_reduction <add>, %77, %cst_42 [0] : vector<32x128xf32> to vector<128xf32>
    %79 = vector.shape_cast %78 : vector<128xf32> to vector<1x128xf32>
    %cst_43 = arith.constant 3.125000e-02 : f32
    %80 = vector.broadcast %cst_43 : f32 to vector<1x128xf32>
    %81 = arith.mulf %79, %80 : vector<1x128xf32>
    %82 = vector.broadcast %81 : vector<1x128xf32> to vector<32x128xf32>
    %83 = arith.subf %77, %82 : vector<32x128xf32>
    %84 = arith.mulf %83, %83 : vector<32x128xf32>
    %85 = vector.broadcast %6 : vector<32x1xf32> to vector<32x128xf32>
    %86 = arith.mulf %84, %85 : vector<32x128xf32>
    %cst_44 = arith.constant dense<0.000000e+00> : vector<128xf32>
    %87 = vector.multi_reduction <add>, %86, %cst_44 [0] : vector<32x128xf32> to vector<128xf32>
    %88 = vector.shape_cast %87 : vector<128xf32> to vector<1x128xf32>
    %cst_45 = arith.constant 3.125000e-02 : f32
    %89 = vector.broadcast %cst_45 : f32 to vector<1x128xf32>
    %90 = arith.mulf %88, %89 : vector<1x128xf32>
    %c1_46 = arith.constant 1 : index
    %c0_47 = arith.constant 0 : index
    %c0_48 = arith.constant 0 : index
    %91 = vector.load %arg5[%c1_46, %c0_47, %c0_48] : memref<2x1x128xf32, #tpu.memory_space<vmem>>, vector<1x1x128xf32>
    %92 = vector.shape_cast %91 : vector<1x1x128xf32> to vector<1x128xf32>
    %cst_49 = arith.constant 9.99999974E-6 : f32
    %93 = vector.broadcast %cst_49 : f32 to vector<1x128xf32>
    %94 = arith.addf %90, %93 : vector<1x128xf32>
    %95 = math.rsqrt %94 : vector<1x128xf32>
    %96 = vector.broadcast %95 : vector<1x128xf32> to vector<32x128xf32>
    %97 = arith.mulf %83, %96 : vector<32x128xf32>
    %98 = vector.broadcast %92 : vector<1x128xf32> to vector<32x128xf32>
    %99 = arith.mulf %98, %97 : vector<32x128xf32>
    %c1_50 = arith.constant 1 : index
    %c0_51 = arith.constant 0 : index
    %c0_52 = arith.constant 0 : index
    %100 = vector.load %arg6[%c1_50, %c0_51, %c0_52] : memref<2x1x128xf32, #tpu.memory_space<vmem>>, vector<1x1x128xf32>
    %101 = vector.shape_cast %100 : vector<1x1x128xf32> to vector<1x128xf32>
    %102 = vector.broadcast %101 : vector<1x128xf32> to vector<32x128xf32>
    %103 = arith.addf %99, %102 : vector<32x128xf32>
    %cst_53 = arith.constant 0.000000e+00 : f32
    %104 = vector.broadcast %cst_53 : f32 to vector<32x128xf32>
    %105 = arith.cmpf oge, %103, %104 : vector<32x128xf32>
    %c1_54 = arith.constant 1 : index
    %c0_55 = arith.constant 0 : index
    %c0_56 = arith.constant 0 : index
    %106 = vector.load %arg8[%c1_54, %c0_55, %c0_56] : memref<2x1x128xf32, #tpu.memory_space<vmem>>, vector<1x1x128xf32>
    %107 = vector.shape_cast %106 : vector<1x1x128xf32> to vector<1x128xf32>
    %108 = vector.broadcast %107 : vector<1x128xf32> to vector<32x128xf32>
    %109 = arith.mulf %108, %103 : vector<32x128xf32>
    %110 = arith.select %105, %103, %109 : vector<32x128xi1>, vector<32x128xf32>
    %111 = vector.broadcast %6 : vector<32x1xf32> to vector<32x128xf32>
    %112 = arith.mulf %110, %111 : vector<32x128xf32>
    %113 = arith.mulf %112, %112 : vector<32x128xf32>
    %cst_57 = arith.constant dense<0.000000e+00> : vector<32xf32>
    %114 = vector.multi_reduction <add>, %113, %cst_57 [1] : vector<32x128xf32> to vector<32xf32>
    %115 = vector.shape_cast %114 : vector<32xf32> to vector<32x1xf32>
    %116 = math.sqrt %115 : vector<32x1xf32>
    %cst_58 = arith.constant 9.99999996E-13 : f32
    %117 = vector.broadcast %cst_58 : f32 to vector<32x1xf32>
    %118 = arith.maximumf %116, %117 : vector<32x1xf32>
    %119 = vector.broadcast %118 : vector<32x1xf32> to vector<32x128xf32>
    %120 = arith.divf %112, %119 : vector<32x128xf32>
    %c0_59 = arith.constant 0 : index
    %c0_60 = arith.constant 0 : index
    %c0_61 = arith.constant 0 : index
    %121 = vector.load %arg9[%c0_59, %c0_60, %c0_61] : memref<1x32x128xf32, #tpu.memory_space<vmem>>, vector<1x32x128xf32>
    %122 = vector.shape_cast %121 : vector<1x32x128xf32> to vector<32x128xf32>
    %123 = vector.shape_cast %120 : vector<32x128xf32> to vector<1x32x128xf32>
    tpu.vector_store %arg9[%c0_59, %c0_60, %c0_61], %123 {strides = array<i32>} : memref<1x32x128xf32, #tpu.memory_space<vmem>>, vector<1x32x128xf32>,
    return
  }
  func.func @transform_0(%arg0: i32) -> (i32, i32, i32) {
    %c0_i32 = arith.constant 0 : i32
    %c0_i32_0 = arith.constant 0 : i32
    %c0_i32_1 = arith.constant 0 : i32
    return %arg0, %c0_i32, %c0_i32_0 : i32, i32, i32
  }
  func.func @transform_1(%arg0: i32) -> (i32, i32, i32) {
    %c0_i32 = arith.constant 0 : i32
    %c0_i32_0 = arith.constant 0 : i32
    %c0_i32_1 = arith.constant 0 : i32
    return %arg0, %c0_i32, %c0_i32_0 : i32, i32, i32
  }
  func.func @transform_2(%arg0: i32) -> (i32, i32, i32) {
    %c0_i32 = arith.constant 0 : i32
    %c0_i32_0 = arith.constant 0 : i32
    %c0_i32_1 = arith.constant 0 : i32
    %c0_i32_2 = arith.constant 0 : i32
    return %c0_i32, %c0_i32_0, %c0_i32_1 : i32, i32, i32
  }
  func.func @transform_3(%arg0: i32) -> (i32, i32, i32) {
    %c0_i32 = arith.constant 0 : i32
    %c0_i32_0 = arith.constant 0 : i32
    %c0_i32_1 = arith.constant 0 : i32
    %c0_i32_2 = arith.constant 0 : i32
    return %c0_i32, %c0_i32_0, %c0_i32_1 : i32, i32, i32
  }
  func.func @transform_4(%arg0: i32) -> (i32, i32, i32) {
    %c0_i32 = arith.constant 0 : i32
    %c0_i32_0 = arith.constant 0 : i32
    %c0_i32_1 = arith.constant 0 : i32
    %c0_i32_2 = arith.constant 0 : i32
    return %c0_i32, %c0_i32_0, %c0_i32_1 : i32, i32, i32
  }
  func.func @transform_5(%arg0: i32) -> (i32, i32, i32) {
    %c0_i32 = arith.constant 0 : i32
    %c0_i32_0 = arith.constant 0 : i32
    %c0_i32_1 = arith.constant 0 : i32
    %c0_i32_2 = arith.constant 0 : i32
    return %c0_i32, %c0_i32_0, %c0_i32_1 : i32, i32, i32
  }
  func.func @transform_6(%arg0: i32) -> (i32, i32, i32) {
    %c0_i32 = arith.constant 0 : i32
    %c0_i32_0 = arith.constant 0 : i32
    %c0_i32_1 = arith.constant 0 : i32
    %c0_i32_2 = arith.constant 0 : i32
    return %c0_i32, %c0_i32_0, %c0_i32_1 : i32, i32, i32
  }
  func.func @transform_7(%arg0: i32) -> (i32, i32, i32) {
    %c0_i32 = arith.constant 0 : i32
    %c0_i32_0 = arith.constant 0 : i32
    %c0_i32_1 = arith.constant 0 : i32
    %c0_i32_2 = arith.constant 0 : i32
    return %c0_i32, %c0_i32_0, %c0_i32_1 : i32, i32, i32
  }
  func.func @transform_8(%arg0: i32) -> (i32, i32, i32) {
    %c0_i32 = arith.constant 0 : i32
    %c0_i32_0 = arith.constant 0 : i32
    %c0_i32_1 = arith.constant 0 : i32
    return %arg0, %c0_i32, %c0_i32_0 : i32, i32, i32
  }
}

</mosaic_0001>

<llo_original>
// kernel: tpu_custom_call.1
$region0: #{tpu_custom_call.1}
  #allocation0 [shape = 'u32[]', space=smem, size = 0x4, offset = 0x4, fixed_abs, tag = 'smem constant byte address 0x4 - core index']
  #allocation1 [shape = 'u32[144,128]{1,0:T(1,128)}', space=vmem, size = 0x12000, scoped, tag = 'internal scratch']
  %s0 = inlined_call_operand.hbm [shape: f32[4,32,32], index: 0, kind: input, shape index: {}]
  %s1 = inlined_call_operand.hbm [shape: f32[4,32,128], index: 1, kind: input, shape index: {}]
  %s2 = inlined_call_operand.hbm [shape: f32[2,128,128], index: 2, kind: input, shape index: {}]
  %s3 = inlined_call_operand.vmem [shape: f32[2,1,128], index: 3, kind: input, shape index: {}]
  %s4 = inlined_call_operand.vmem [shape: f32[2,1,128], index: 4, kind: input, shape index: {}]
  %s5 = inlined_call_operand.vmem [shape: f32[2,1,128], index: 5, kind: input, shape index: {}]
  %s6 = inlined_call_operand.vmem [shape: f32[2,1,128], index: 6, kind: input, shape index: {}]
  %s7 = inlined_call_operand.vmem [shape: f32[2,1,128], index: 7, kind: input, shape index: {}]
  %s8 = inlined_call_operand.hbm [shape: f32[4,32,128], index: 8, kind: output, shape index: {}]
  %s9 = sld [smem:[#allocation0]]
  $region77: #{tpu_custom_call.1} parent=0
    _
  %s11 = ssub.s32 1, %s9
  %s12 = scalar_select 0, %s11, %s9
  $region1: #{tpu_custom_call.1} parent=0
    #allocation2 [shape = 'u8[32768]{0}', space=vmem, size = 0x8000, scoped, tag = 'input window, operand 0']
    #allocation3 [shape = 's32[2]{0}', space=sflag, size = 0x8, scoped, tag = 'scoped memory for tpu_custom_call.1']
    #allocation4 [shape = 's32[2]{0}', space=sflag, size = 0x8, scoped, tag = 'scoped memory for tpu_custom_call.1']
    #allocation5 [shape = 'u8[32768]{0}', space=vmem, size = 0x8000, scoped, tag = 'input window, operand 1']
    #allocation6 [shape = 's32[2]{0}', space=sflag, size = 0x8, scoped, tag = 'scoped memory for tpu_custom_call.1']
    #allocation7 [shape = 'u8[131072]{0}', space=vmem, size = 0x20000, scoped, tag = 'input window, operand 2, single buffered']
    #allocation8 [shape = 'u8[32768]{0}', space=vmem, size = 0x8000, scoped, tag = 'output window, operand 0']
    %13 = vsyncpa [#allocation3], 0
    %s14 = scalar_lea.sflag [#allocation3], 1
    %15 = vsyncpa %s14, 0
    %16 = vsyncpa [#allocation6], 0
    %s17 = scalar_lea.sflag [#allocation6], 1
    %18 = vsyncpa %s17, 0
    %19 = vsyncpa [#allocation4], 0
    %s20 = scalar_lea.sflag [#allocation4], 1
    %21 = vsyncpa %s20, 0
    loop: start=0, step=1, limit=6
    $region2: #{tpu_custom_call.1} parent=1 // loop_pre_header
      _
    $region3: #{tpu_custom_call.1} parent=1 // loop_header
      %s23 = sphi 0, %s27
      %p24 = scmp.ge.s32.totalorder %s23, 6
      %s33 = sphi 0, %s35
      %s36 = sphi 0, %s33
      %s37 = sphi 0, %s36
      %s53 = sphi 0, %s37
      %s59 = sphi 0, %s61
      %s62 = sphi 0, %s59
      %s63 = sphi 0, %s62
      %s79 = sphi 0, %s63
      %s83 = sphi 0, %s83
      %s85 = sphi 0, %s83
      %s86 = sphi 0, %s85
      %s100 = sphi 0, %s86
      %s104 = sphi 0, %s104
      %s106 = sphi 0, %s104
      %s107 = sphi 0, %s106
      %s121 = sphi 0, %s107
      %s125 = sphi 0, %s125
      %s127 = sphi 0, %s125
      %s128 = sphi 0, %s127
      %s142 = sphi 0, %s128
      %s146 = sphi 0, %s146
      %s148 = sphi 0, %s146
      %s149 = sphi 0, %s148
      %s163 = sphi 0, %s149
      %s167 = sphi 0, %s167
      %s169 = sphi 0, %s167
      %s170 = sphi 0, %s169
      %s184 = sphi 0, %s170
      %s188 = sphi 0, %s188
      %s190 = sphi 0, %s188
      %s191 = sphi 0, %s190
      %s205 = sphi 0, %s191
      %s211 = sphi 0, %s213
      %s214 = sphi 0, %s211
      %s215 = sphi 0, %s214
      %s231 = sphi 0, %s215
    $region4: #{tpu_custom_call.1} parent=1 // loop_header_branch
      %26 = sbr.rel (%p24) target = $region8
    $region5: #{tpu_custom_call.1} parent=1 // loop_body
      %s28 = ssub.s32 %s23, 1
      %s29 = ssub.s32 %s23, 2
      %s30 = sadd.s32 %s23, 1
      %s31 = ssub.s32 %s23, %s30
      %p32 = scmp.eq.s32.totalorder %s31, 0
      %s34 = sadd.s32 %s33, 1
      %s35 = scalar_select %p32, %s33, %s34
      %p38 = pneg %p32
      %p39 = scmp.eq.s32.totalorder %s23, 3
      %p40 = por %p38, %p39
      %p41 = scmp.ne.s32.totalorder %s33, %s36
      %p42 = scmp.eq.s32.totalorder %s23, 0
      %p43 = por %p41, %p42
      %p44 = scmp.ne.s32.totalorder %s33, %s36
      %p45 = scmp.eq.s32.totalorder %s28, 3
      %p46 = por %p44, %p45
      %p47 = scmp.ne.s32.totalorder %s36, %s37
      %p48 = scmp.eq.s32.totalorder %s28, 0
      %p49 = por %p47, %p48
      %p50 = scmp.ne.s32.totalorder %s36, %s37
      %p51 = scmp.eq.s32.totalorder %s29, 3
      %p52 = por %p50, %p51
      %p54 = scmp.ne.s32.totalorder %s37, %s53
      %p55 = scmp.eq.s32.totalorder %s29, 0
      %p56 = por %p54, %p55
      %s57 = ssub.s32 %s23, %s30
      %p58 = scmp.eq.s32.totalorder %s57, 0
      %s60 = sadd.s32 %s59, 1
      %s61 = scalar_select %p58, %s59, %s60
      %p64 = pneg %p58
      %p65 = scmp.eq.s32.totalorder %s23, 3
      %p66 = por %p64, %p65
      %p67 = scmp.ne.s32.totalorder %s59, %s62
      %p68 = scmp.eq.s32.totalorder %s23, 0
      %p69 = por %p67, %p68
      %p70 = scmp.ne.s32.totalorder %s59, %s62
      %p71 = scmp.eq.s32.totalorder %s28, 3
      %p72 = por %p70, %p71
      %p73 = scmp.ne.s32.totalorder %s62, %s63
      %p74 = scmp.eq.s32.totalorder %s28, 0
      %p75 = por %p73, %p74
      %p76 = scmp.ne.s32.totalorder %s62, %s63
      %p77 = scmp.eq.s32.totalorder %s29, 3
      %p78 = por %p76, %p77
      %p80 = scmp.ne.s32.totalorder %s63, %s79
      %p81 = scmp.eq.s32.totalorder %s29, 0
      %p82 = por %p80, %p81
      %s84 = sadd.s32 %s83, 1
      %p87 = scmp.eq.s32.totalorder %s23, 3
      %p88 = scmp.ne.s32.totalorder %s83, %s85
      %p89 = scmp.eq.s32.totalorder %s23, 0
      %p90 = por %p88, %p89
      %p91 = scmp.ne.s32.totalorder %s83, %s85
      %p92 = scmp.eq.s32.totalorder %s28, 3
      %p93 = por %p91, %p92
      %p94 = scmp.ne.s32.totalorder %s85, %s86
      %p95 = scmp.eq.s32.totalorder %s28, 0
      %p96 = por %p94, %p95
      %p97 = scmp.ne.s32.totalorder %s85, %s86
      %p98 = scmp.eq.s32.totalorder %s29, 3
      %p99 = por %p97, %p98
      %p101 = scmp.ne.s32.totalorder %s86, %s100
      %p102 = scmp.eq.s32.totalorder %s29, 0
      %p103 = por %p101, %p102
      %s105 = sadd.s32 %s104, 1
      %p108 = scmp.eq.s32.totalorder %s23, 3
      %p109 = scmp.ne.s32.totalorder %s104, %s106
      %p110 = scmp.eq.s32.totalorder %s23, 0
      %p111 = por %p109, %p110
      %p112 = scmp.ne.s32.totalorder %s104, %s106
      %p113 = scmp.eq.s32.totalorder %s28, 3
      %p114 = por %p112, %p113
      %p115 = scmp.ne.s32.totalorder %s106, %s107
      %p116 = scmp.eq.s32.totalorder %s28, 0
      %p117 = por %p115, %p116
      %p118 = scmp.ne.s32.totalorder %s106, %s107
      %p119 = scmp.eq.s32.totalorder %s29, 3
      %p120 = por %p118, %p119
      %p122 = scmp.ne.s32.totalorder %s107, %s121
      %p123 = scmp.eq.s32.totalorder %s29, 0
      %p124 = por %p122, %p123
      %s126 = sadd.s32 %s125, 1
      %p129 = scmp.eq.s32.totalorder %s23, 3
      %p130 = scmp.ne.s32.totalorder %s125, %s127
      %p131 = scmp.eq.s32.totalorder %s23, 0
      %p132 = por %p130, %p131
      %p133 = scmp.ne.s32.totalorder %s125, %s127
      %p134 = scmp.eq.s32.totalorder %s28, 3
      %p135 = por %p133, %p134
      %p136 = scmp.ne.s32.totalorder %s127, %s128
      %p137 = scmp.eq.s32.totalorder %s28, 0
      %p138 = por %p136, %p137
      %p139 = scmp.ne.s32.totalorder %s127, %s128
      %p140 = scmp.eq.s32.totalorder %s29, 3
      %p141 = por %p139, %p140
      %p143 = scmp.ne.s32.totalorder %s128, %s142
      %p144 = scmp.eq.s32.totalorder %s29, 0
      %p145 = por %p143, %p144
      %s147 = sadd.s32 %s146, 1
      %p150 = scmp.eq.s32.totalorder %s23, 3
      %p151 = scmp.ne.s32.totalorder %s146, %s148
      %p152 = scmp.eq.s32.totalorder %s23, 0
      %p153 = por %p151, %p152
      %p154 = scmp.ne.s32.totalorder %s146, %s148
      %p155 = scmp.eq.s32.totalorder %s28, 3
      %p156 = por %p154, %p155
      %p157 = scmp.ne.s32.totalorder %s148, %s149
      %p158 = scmp.eq.s32.totalorder %s28, 0
      %p159 = por %p157, %p158
      %p160 = scmp.ne.s32.totalorder %s148, %s149
      %p161 = scmp.eq.s32.totalorder %s29, 3
      %p162 = por %p160, %p161
      %p164 = scmp.ne.s32.totalorder %s149, %s163
      %p165 = scmp.eq.s32.totalorder %s29, 0
      %p166 = por %p164, %p165
      %s168 = sadd.s32 %s167, 1
      %p171 = scmp.eq.s32.totalorder %s23, 3
      %p172 = scmp.ne.s32.totalorder %s167, %s169
      %p173 = scmp.eq.s32.totalorder %s23, 0
      %p174 = por %p172, %p173
      %p175 = scmp.ne.s32.totalorder %s167, %s169
      %p176 = scmp.eq.s32.totalorder %s28, 3
      %p177 = por %p175, %p176
      %p178 = scmp.ne.s32.totalorder %s169, %s170
      %p179 = scmp.eq.s32.totalorder %s28, 0
      %p180 = por %p178, %p179
      %p181 = scmp.ne.s32.totalorder %s169, %s170
      %p182 = scmp.eq.s32.totalorder %s29, 3
      %p183 = por %p181, %p182
      %p185 = scmp.ne.s32.totalorder %s170, %s184
      %p186 = scmp.eq.s32.totalorder %s29, 0
      %p187 = por %p185, %p186
      %s189 = sadd.s32 %s188, 1
      %p192 = scmp.eq.s32.totalorder %s23, 3
      %p193 = scmp.ne.s32.totalorder %s188, %s190
      %p194 = scmp.eq.s32.totalorder %s23, 0
      %p195 = por %p193, %p194
      %p196 = scmp.ne.s32.totalorder %s188, %s190
      %p197 = scmp.eq.s32.totalorder %s28, 3
      %p198 = por %p196, %p197
      %p199 = scmp.ne.s32.totalorder %s190, %s191
      %p200 = scmp.eq.s32.totalorder %s28, 0
      %p201 = por %p199, %p200
      %p202 = scmp.ne.s32.totalorder %s190, %s191
      %p203 = scmp.eq.s32.totalorder %s29, 3
      %p204 = por %p202, %p203
      %p206 = scmp.ne.s32.totalorder %s191, %s205
      %p207 = scmp.eq.s32.totalorder %s29, 0
      %p208 = por %p206, %p207
      %s209 = ssub.s32 %s23, %s30
      %p210 = scmp.eq.s32.totalorder %s209, 0
      %s212 = sadd.s32 %s211, 1
      %s213 = scalar_select %p210, %s211, %s212
      %p216 = pneg %p210
      %p217 = scmp.eq.s32.totalorder %s23, 3
      %p218 = por %p216, %p217
      %p219 = scmp.ne.s32.totalorder %s211, %s214
      %p220 = scmp.eq.s32.totalorder %s23, 0
      %p221 = por %p219, %p220
      %p222 = scmp.ne.s32.totalorder %s211, %s214
      %p223 = scmp.eq.s32.totalorder %s28, 3
      %p224 = por %p222, %p223
      %p225 = scmp.ne.s32.totalorder %s214, %s215
      %p226 = scmp.eq.s32.totalorder %s28, 0
      %p227 = por %p225, %p226
      %p228 = scmp.ne.s32.totalorder %s214, %s215
      %p229 = scmp.eq.s32.totalorder %s29, 3
      %p230 = por %p228, %p229
      %p232 = scmp.ne.s32.totalorder %s215, %s231
      %p233 = scmp.eq.s32.totalorder %s29, 0
      %p234 = por %p232, %p233
      %p235 = scmp.le.s32.totalorder 1, %s23
      %p236 = scmp.lt.s32.totalorder %s23, 5
      %p237 = pnand %p235, %p236
      %p238 = pneg %p237
      // Predicated region
      $region9: #{tpu_custom_call.1} parent=5 // pred_check
        _
      $region10: #{tpu_custom_call.1} parent=5 // pred_check_branch
        %240 = sbr.rel (%p237) target = $region12
      $region11: #{tpu_custom_call.1} parent=5 // pred_region
        %s241 = ssub.s32 %s23, 1
        // Predicated region
        $region13: #{tpu_custom_call.1} parent=11 // pred_check
          %p242 = pneg %p96
        $region14: #{tpu_custom_call.1} parent=11 // pred_check_branch
          %244 = sbr.rel (%p242) target = $region16
        $region15: #{tpu_custom_call.1} parent=11 // pred_region
          %s246 = ssub.s32 4096, 4096
          %247 = vsyncadd [#allocation6], %s246
          %s248 = sshll.u32 [#allocation7], 4
          %s249 = int_to_ptr.vmem [resolvable:$true] %s248
          %254 = dma.hbm_to_vmem [thread:$0]  %s2, 4096, %s249, [#allocation6], 128, 128, 8
        $region16: #{tpu_custom_call.1} parent=11 // pred_fallthru
          _
        // Predicated region
        $region17: #{tpu_custom_call.1} parent=11 // pred_check
          %p255 = pneg %p117
        $region18: #{tpu_custom_call.1} parent=11 // pred_check_branch
          %257 = sbr.rel (%p255) target = $region20
        $region19: #{tpu_custom_call.1} parent=11 // pred_region
          _
        $region20: #{tpu_custom_call.1} parent=11 // pred_fallthru
          _
        // Predicated region
        $region21: #{tpu_custom_call.1} parent=11 // pred_check
          %p258 = pneg %p138
        $region22: #{tpu_custom_call.1} parent=11 // pred_check_branch
          %260 = sbr.rel (%p258) target = $region24
        $region23: #{tpu_custom_call.1} parent=11 // pred_region
          _
        $region24: #{tpu_custom_call.1} parent=11 // pred_fallthru
          _
        // Predicated region
        $region25: #{tpu_custom_call.1} parent=11 // pred_check
          %p261 = pneg %p159
        $region26: #{tpu_custom_call.1} parent=11 // pred_check_branch
          %263 = sbr.rel (%p261) target = $region28
        $region27: #{tpu_custom_call.1} parent=11 // pred_region
          _
        $region28: #{tpu_custom_call.1} parent=11 // pred_fallthru
          _
        // Predicated region
        $region29: #{tpu_custom_call.1} parent=11 // pred_check
          %p264 = pneg %p180
        $region30: #{tpu_custom_call.1} parent=11 // pred_check_branch
          %266 = sbr.rel (%p264) target = $region32
        $region31: #{tpu_custom_call.1} parent=11 // pred_region
          _
        $region32: #{tpu_custom_call.1} parent=11 // pred_fallthru
          _
        // Predicated region
        $region33: #{tpu_custom_call.1} parent=11 // pred_check
          %p267 = pneg %p201
        $region34: #{tpu_custom_call.1} parent=11 // pred_check_branch
          %269 = sbr.rel (%p267) target = $region36
        $region35: #{tpu_custom_call.1} parent=11 // pred_region
          _
        $region36: #{tpu_custom_call.1} parent=11 // pred_fallthru
          _
      $region12: #{tpu_custom_call.1} parent=5 // pred_fallthru
        _
      %p270 = scmp.lt.s32.totalorder %s23, 4
      // Predicated region
      $region37: #{tpu_custom_call.1} parent=5 // pred_check
        %p271 = pneg %p270
      $region38: #{tpu_custom_call.1} parent=5 // pred_check_branch
        %273 = sbr.rel (%p271) target = $region40
      $region39: #{tpu_custom_call.1} parent=5 // pred_region
        // Predicated region
        $region41: #{tpu_custom_call.1} parent=39 // pred_check
          %p274 = pneg %p43
        $region42: #{tpu_custom_call.1} parent=39 // pred_check_branch
          %276 = sbr.rel (%p274) target = $region44
        $region43: #{tpu_custom_call.1} parent=39 // pred_region
          %s277 = sand.u32 %s33, 1
          %s278 = scalar_lea.sflag [#allocation3], %s277
          %s279 = sand.u32 %s33, 1
          %s280 = smul.addr %s279, 32
          %s281 = scalar_lea.vmem [#allocation2], %s280
          %s283 = ssub.s32 512, 512
          %284 = vsyncadd %s278, %s283
          %s285 = smul.addr %s23, 4
          %s286 = smul.addr %s285, 128
          %s287 = scalar_lea.hbm %s0, %s286
          %s288 = sshll.u32 %s281, 4
          %s289 = int_to_ptr.vmem [resolvable:$true] %s288
          %294 = dma.hbm_to_vmem [thread:$0]  %s287, 512, %s289, %s278, 128, 128, 8
        $region44: #{tpu_custom_call.1} parent=39 // pred_fallthru
          _
        // Predicated region
        $region45: #{tpu_custom_call.1} parent=39 // pred_check
          %p295 = pneg %p69
        $region46: #{tpu_custom_call.1} parent=39 // pred_check_branch
          %297 = sbr.rel (%p295) target = $region48
        $region47: #{tpu_custom_call.1} parent=39 // pred_region
          %s298 = sand.u32 %s23, 1
          %s299 = scalar_lea.sflag [#allocation6], %s298
          %s300 = sand.u32 %s59, 1
          %s301 = smul.addr %s300, 32
          %s302 = scalar_lea.vmem [#allocation5], %s301
          %s304 = ssub.s32 512, 512
          %305 = vsyncadd %s299, %s304
          %s306 = smul.addr %s23, 4
          %s307 = smul.addr %s306, 128
          %s308 = scalar_lea.hbm %s1, %s307
          %s309 = sshll.u32 %s302, 4
          %s310 = int_to_ptr.vmem [resolvable:$true] %s309
          %315 = dma.hbm_to_vmem [thread:$0]  %s308, 512, %s310, %s299, 128, 128, 8
        $region48: #{tpu_custom_call.1} parent=39 // pred_fallthru
          _
      $region40: #{tpu_custom_call.1} parent=5 // pred_fallthru
        _
      %p316 = scmp.le.s32.totalorder 1, %s23
      %p317 = scmp.lt.s32.totalorder %s23, 5
      %p318 = pnand %p316, %p317
      %p319 = pneg %p318
      // Predicated region
      $region49: #{tpu_custom_call.1} parent=5 // pred_check
        _
      $region50: #{tpu_custom_call.1} parent=5 // pred_check_branch
        %321 = sbr.rel (%p318) target = $region52
      $region51: #{tpu_custom_call.1} parent=5 // pred_region
        %s322 = ssub.s32 %s23, 1
        %s323 = sand.u32 %s36, 1
        %s324 = scalar_lea.sflag [#allocation3], %s323
        %s325 = sand.u32 %s36, 1
        %s326 = smul.addr %s325, 32
        %s327 = scalar_lea.vmem [#allocation2], %s326
        // Predicated region
        $region53: #{tpu_custom_call.1} parent=51 // pred_check
          %p328 = pneg %p49
        $region54: #{tpu_custom_call.1} parent=51 // pred_check_branch
          %330 = sbr.rel (%p328) target = $region56
        $region55: #{tpu_custom_call.1} parent=51 // pred_region
          %331 = dma.done %s324, 512
        $region56: #{tpu_custom_call.1} parent=51 // pred_fallthru
          _
        %s332 = sand.u32 %s28, 1
        %s333 = scalar_lea.sflag [#allocation6], %s332
        %s334 = sand.u32 %s62, 1
        %s335 = smul.addr %s334, 32
        %s336 = scalar_lea.vmem [#allocation5], %s335
        // Predicated region
        $region57: #{tpu_custom_call.1} parent=51 // pred_check
          %p337 = pneg %p75
        $region58: #{tpu_custom_call.1} parent=51 // pred_check_branch
          %339 = sbr.rel (%p337) target = $region60
        $region59: #{tpu_custom_call.1} parent=51 // pred_region
          %340 = dma.done %s333, 512
        $region60: #{tpu_custom_call.1} parent=51 // pred_fallthru
          _
        // Predicated region
        $region61: #{tpu_custom_call.1} parent=51 // pred_check
          %p341 = pneg %p96
        $region62: #{tpu_custom_call.1} parent=51 // pred_check_branch
          %343 = sbr.rel (%p341) target = $region64
        $region63: #{tpu_custom_call.1} parent=51 // pred_region
          %344 = dma.done [#allocation6], 4096
        $region64: #{tpu_custom_call.1} parent=51 // pred_fallthru
          _
        %s345 = sand.u32 %s36, 1
        %s346 = scalar_lea.sflag [#allocation3], %s345
        %s347 = sand.u32 %s36, 1
        %s348 = smul.addr %s347, 32
        %s349 = scalar_lea.vmem [#allocation2], %s348
        %p350 = pneg %p49
        %p351 = pneg %p46
        %s352 = sand.u32 %s28, 1
        %s353 = scalar_lea.sflag [#allocation6], %s352
        %s354 = sand.u32 %s62, 1
        %s355 = smul.addr %s354, 32
        %s356 = scalar_lea.vmem [#allocation5], %s355
        %p357 = pneg %p75
        %p358 = pneg %p72
        %p359 = pneg %p96
        %p360 = pneg %p93
        %p361 = pneg %p117
        %p362 = pneg %p114
        %p363 = pneg %p138
        %p364 = pneg %p135
        %p365 = pneg %p159
        %p366 = pneg %p156
        %p367 = pneg %p180
        %p368 = pneg %p177
        %p369 = pneg %p201
        %p370 = pneg %p198
        %p371 = pneg %p227
        %p372 = pneg %p224
        %s373 = sand.u32 %s214, 1
        %s374 = scalar_lea.sflag [#allocation4], %s373
        %s375 = sand.u32 %s214, 1
        %s376 = smul.addr %s375, 32
        %s377 = scalar_lea.vmem [#allocation8], %s376
        %v378 = vld [vmem:[%s327] sm:$0xff]
        %v379 = vld [vmem:[%s327 + $0x8] sm:$0xff]
        %v380 = vld [vmem:[%s327 + $0x10] sm:$0xff]
        %v381 = vld [vmem:[%s327 + $0x18] sm:$0xff]
        %v382 = vlaneseq
        %v383 = vshrl.u32 %v382, 7
        %v384 = vadd.s32 %v383, 8
        %v385 = vadd.s32 %v383, 16
        %v386 = vadd.s32 %v383, 24
        %vm387 = vcmp.lt.s32.totalorder %v383, 32
        %vm388 = vcmp.lt.s32.totalorder %v384, 32
        %vm389 = vcmp.lt.s32.totalorder %v385, 32
        %vm390 = vcmp.lt.s32.totalorder %v386, 32
        %v391 = vsel %vm387, 1, 0
        %v392 = vsel %vm388, 1, 0
        %v393 = vsel %vm389, 1, 0
        %v394 = vsel %vm390, 1, 0
        %v395 = vcvt.s32.f32 %v391
        %v396 = vcvt.s32.f32 %v392
        %v397 = vcvt.s32.f32 %v393
        %v398 = vcvt.s32.f32 %v394
        %v399 = vld [vmem:[%s336] sm:$0xff]
        %v400 = vld [vmem:[%s336 + $0x8] sm:$0xff]
        %v401 = vld [vmem:[%s336 + $0x10] sm:$0xff]
        %v402 = vld [vmem:[%s336 + $0x18] sm:$0xff]
        %v403 = vld [vmem:[#allocation7] sm:$0xff]
        %v404 = vld [vmem:[#allocation7 + $0x8] sm:$0xff]
        %v405 = vld [vmem:[#allocation7 + $0x10] sm:$0xff]
        %v406 = vld [vmem:[#allocation7 + $0x18] sm:$0xff]
        %v407 = vld [vmem:[#allocation7 + $0x20] sm:$0xff]
        %v408 = vld [vmem:[#allocation7 + $0x28] sm:$0xff]
        %v409 = vld [vmem:[#allocation7 + $0x30] sm:$0xff]
        %v410 = vld [vmem:[#allocation7 + $0x38] sm:$0xff]
        %v411 = vld [vmem:[#allocation7 + $0x40] sm:$0xff]
        %v412 = vld [vmem:[#allocation7 + $0x48] sm:$0xff]
        %v413 = vld [vmem:[#allocation7 + $0x50] sm:$0xff]
        %v414 = vld [vmem:[#allocation7 + $0x58] sm:$0xff]
        %v415 = vld [vmem:[#allocation7 + $0x60] sm:$0xff]
        %v416 = vld [vmem:[#allocation7 + $0x68] sm:$0xff]
        %v417 = vld [vmem:[#allocation7 + $0x70] sm:$0xff]
        %v418 = vld [vmem:[#allocation7 + $0x78] sm:$0xff]
        %419 = vmatprep.subr.mxu0 0.0
        %420 = vmatpush1.msra.mxu0 %v403
        %421 = vmatprep.subr.mxu0 0.0
        %422 = vmatpush1.msra.mxu0 %v404
        %423 = vmatprep.subr.mxu0 0.0
        %424 = vmatpush1.msra.mxu0 %v405
        %425 = vmatprep.subr.mxu0 0.0
        %426 = vmatpush1.msra.mxu0 %v406
        %427 = vmatprep.subr.mxu0 0.0
        %428 = vmatpush1.msra.mxu0 %v407
        %429 = vmatprep.subr.mxu0 0.0
        %430 = vmatpush1.msra.mxu0 %v408
        %431 = vmatprep.subr.mxu0 0.0
        %432 = vmatpush1.msra.mxu0 %v409
        %433 = vmatprep.subr.mxu0 0.0
        %434 = vmatpush1.msra.mxu0 %v410
        %435 = vmatprep.subr.mxu0 0.0
        %436 = vmatpush1.msra.mxu0 %v411
        %437 = vmatprep.subr.mxu0 0.0
        %438 = vmatpush1.msra.mxu0 %v412
        %439 = vmatprep.subr.mxu0 0.0
        %440 = vmatpush1.msra.mxu0 %v413
        %441 = vmatprep.subr.mxu0 0.0
        %442 = vmatpush1.msra.mxu0 %v414
        %443 = vmatprep.subr.mxu0 0.0
        %444 = vmatpush1.msra.mxu0 %v415
        %445 = vmatprep.subr.mxu0 0.0
        %446 = vmatpush1.msra.mxu0 %v416
        %447 = vmatprep.subr.mxu0 0.0
        %448 = vmatpush1.msra.mxu0 %v417
        %449 = vmatprep.subr.mxu0 0.0
        %450 = vmatpush1.msra.mxu0 %v418
        %451 = vmatprep.subr.mxu0 0.0
        %452 = vmatpush1.msra.mxu0 0.0
        %453 = vmatprep.subr.mxu0 0.0
        %454 = vmatpush1.msra.mxu0 0.0
        %455 = vmatprep.subr.mxu0 0.0
        %456 = vmatpush1.msra.mxu0 0.0
        %457 = vmatprep.subr.mxu0 0.0
        %458 = vmatpush1.msra.mxu0 0.0
        %459 = vmatprep.subr.mxu0 0.0
        %460 = vmatpush1.msra.mxu0 0.0
        %461 = vmatprep.subr.mxu0 0.0
        %462 = vmatpush1.msra.mxu0 0.0
        %463 = vmatprep.subr.mxu0 0.0
        %464 = vmatpush1.msra.mxu0 0.0
        %465 = vmatprep.subr.mxu0 0.0
        %466 = vmatpush1.msra.mxu0 0.0
        %467 = vmatprep.subr.mxu0 0.0
        %468 = vmatpush1.msra.mxu0 0.0
        %469 = vmatprep.subr.mxu0 0.0
        %470 = vmatpush1.msra.mxu0 0.0
        %471 = vmatprep.subr.mxu0 0.0
        %472 = vmatpush1.msra.mxu0 0.0
        %473 = vmatprep.subr.mxu0 0.0
        %474 = vmatpush1.msra.mxu0 0.0
        %475 = vmatprep.subr.mxu0 0.0
        %476 = vmatpush1.msra.mxu0 0.0
        %477 = vmatprep.subr.mxu0 0.0
        %478 = vmatpush1.msra.mxu0 0.0
        %479 = vmatprep.subr.mxu0 0.0
        %480 = vmatpush1.msra.mxu0 0.0
        %481 = vmatprep.subr.mxu0 0.0
        %482 = vmatpush1.msra.mxu0 0.0
        %483 = vmatprep.mubr.f32.mxu0 0.0
        %484 = vmatmul.mubr.f32.gmra.mrb[0].mxu0 %v399
        %v485 = vpop.f32.mrb[0].mxu0
        %v486 = vadd.f32 0.0, %v485
        %v487 = vpop.f32.mrb[0].mxu0
        %488 = vmatprep.mubr.f32.mxu0 0.0
        %489 = vmatmul.mubr.f32.gmra.mrb[0].mxu0 %v400
        %v490 = vpop.f32.mrb[0].mxu0
        %v491 = vadd.f32 0.0, %v490
        %v492 = vpop.f32.mrb[0].mxu0
        %493 = vmatprep.mubr.f32.mxu0 0.0
        %494 = vmatmul.mubr.f32.gmra.mrb[0].mxu0 %v401
        %v495 = vpop.f32.mrb[0].mxu0
        %v496 = vadd.f32 0.0, %v495
        %v497 = vpop.f32.mrb[0].mxu0
        %498 = vmatprep.mubr.f32.mxu0 0.0
        %499 = vmatmul.mubr.f32.gmra.mrb[0].mxu0 %v402
        %v500 = vpop.f32.mrb[0].mxu0
        %v501 = vadd.f32 0.0, %v500
        %v502 = vpop.f32.mrb[0].mxu0
        %503 = vdwg.mxu0
        %v504 = vld [vmem:[%s3] sm:$0x1]
        %v506 = vlaneseq
        %v507 = vshrl.u32 %v506, 7
        %v508 = vsub.s32 0, %v507
        %v509 = vrot.slane %v504, %v508
        %vm511 = vcmask 261120
        %v513 = vsel %vm511, %v378, 0
        %v516 = vsel %vm511, %v379, 0
        %v519 = vsel %vm511, %v380, 0
        %v522 = vsel %vm511, %v381, 0
        %524 = vmatprep.subr.mxu0 0.0
        %525 = vmatpush1.msra.mxu0 %v486
        %526 = vmatprep.subr.mxu0 0.0
        %527 = vmatpush1.msra.mxu0 %v491
        %528 = vmatprep.subr.mxu0 0.0
        %529 = vmatpush1.msra.mxu0 %v496
        %530 = vmatprep.subr.mxu0 0.0
        %531 = vmatpush1.msra.mxu0 %v501
        %532 = vmatprep.subr.mxu0 0.0
        %533 = vmatpush1.msra.mxu0 0.0
        %534 = vmatprep.subr.mxu0 0.0
        %535 = vmatpush1.msra.mxu0 0.0
        %536 = vmatprep.subr.mxu0 0.0
        %537 = vmatpush1.msra.mxu0 0.0
        %538 = vmatprep.subr.mxu0 0.0
        %539 = vmatpush1.msra.mxu0 0.0
        %540 = vmatprep.subr.mxu0 0.0
        %541 = vmatpush1.msra.mxu0 0.0
        %542 = vmatprep.subr.mxu0 0.0
        %543 = vmatpush1.msra.mxu0 0.0
        %544 = vmatprep.subr.mxu0 0.0
        %545 = vmatpush1.msra.mxu0 0.0
        %546 = vmatprep.subr.mxu0 0.0
        %547 = vmatpush1.msra.mxu0 0.0
        %548 = vmatprep.subr.mxu0 0.0
        %549 = vmatpush1.msra.mxu0 0.0
        %550 = vmatprep.subr.mxu0 0.0
        %551 = vmatpush1.msra.mxu0 0.0
        %552 = vmatprep.subr.mxu0 0.0
        %553 = vmatpush1.msra.mxu0 0.0
        %554 = vmatprep.subr.mxu0 0.0
        %555 = vmatpush1.msra.mxu0 0.0
        %556 = vmatprep.subr.mxu0 0.0
        %557 = vmatpush1.msra.mxu0 0.0
        %558 = vmatprep.subr.mxu0 0.0
        %559 = vmatpush1.msra.mxu0 0.0
        %560 = vmatprep.subr.mxu0 0.0
        %561 = vmatpush1.msra.mxu0 0.0
        %562 = vmatprep.subr.mxu0 0.0
        %563 = vmatpush1.msra.mxu0 0.0
        %564 = vmatprep.subr.mxu0 0.0
        %565 = vmatpush1.msra.mxu0 0.0
        %566 = vmatprep.subr.mxu0 0.0
        %567 = vmatpush1.msra.mxu0 0.0
        %568 = vmatprep.subr.mxu0 0.0
        %569 = vmatpush1.msra.mxu0 0.0
        %570 = vmatprep.subr.mxu0 0.0
        %571 = vmatpush1.msra.mxu0 0.0
        %572 = vmatprep.subr.mxu0 0.0
        %573 = vmatpush1.msra.mxu0 0.0
        %574 = vmatprep.subr.mxu0 0.0
        %575 = vmatpush1.msra.mxu0 0.0
        %576 = vmatprep.subr.mxu0 0.0
        %577 = vmatpush1.msra.mxu0 0.0
        %578 = vmatprep.subr.mxu0 0.0
        %579 = vmatpush1.msra.mxu0 0.0
        %580 = vmatprep.subr.mxu0 0.0
        %581 = vmatpush1.msra.mxu0 0.0
        %582 = vmatprep.subr.mxu0 0.0
        %583 = vmatpush1.msra.mxu0 0.0
        %584 = vmatprep.subr.mxu0 0.0
        %585 = vmatpush1.msra.mxu0 0.0
        %586 = vmatprep.subr.mxu0 0.0
        %587 = vmatpush1.msra.mxu0 0.0
        %588 = vmatprep.mubr.f32.mxu0 0.0
        %589 = vmatmul.mubr.f32.gmra.mrb[0].mxu0 %v513
        %v590 = vpop.f32.mrb[0].mxu0
        %v591 = vadd.f32 %v509, %v590
        %v592 = vpop.f32.mrb[0].mxu0
        %593 = vmatprep.mubr.f32.mxu0 0.0
        %594 = vmatmul.mubr.f32.gmra.mrb[0].mxu0 %v516
        %v595 = vpop.f32.mrb[0].mxu0
        %v596 = vadd.f32 %v509, %v595
        %v597 = vpop.f32.mrb[0].mxu0
        %598 = vmatprep.mubr.f32.mxu0 0.0
        %599 = vmatmul.mubr.f32.gmra.mrb[0].mxu0 %v519
        %v600 = vpop.f32.mrb[0].mxu0
        %v601 = vadd.f32 %v509, %v600
        %v602 = vpop.f32.mrb[0].mxu0
        %603 = vmatprep.mubr.f32.mxu0 0.0
        %604 = vmatmul.mubr.f32.gmra.mrb[0].mxu0 %v522
        %v605 = vpop.f32.mrb[0].mxu0
        %v606 = vadd.f32 %v509, %v605
        %v607 = vpop.f32.mrb[0].mxu0
        %608 = vdwg.mxu0
        %vm609 = vcmp.ge.f32.partialorder %v591, 0.0
        %vm610 = vcmp.ge.f32.partialorder %v596, 0.0
        %vm611 = vcmp.ge.f32.partialorder %v601, 0.0
        %vm612 = vcmp.ge.f32.partialorder %v606, 0.0
        %v613 = vld [vmem:[%s6] sm:$0x1]
        %v615 = vlaneseq
        %v616 = vshrl.u32 %v615, 7
        %v617 = vsub.s32 0, %v616
        %v618 = vrot.slane %v613, %v617
        %v620 = vmul.f32 %v618, %v591
        %v621 = vmul.f32 %v618, %v596
        %v622 = vmul.f32 %v618, %v601
        %v623 = vmul.f32 %v618, %v606
        %v624 = vsel %vm609, %v591, %v620
        %v625 = vsel %vm610, %v596, %v621
        %v626 = vsel %vm611, %v601, %v622
        %v627 = vsel %vm612, %v606, %v623
        %v628 = vmul.f32 %v624, %v395
        %v629 = vmul.f32 %v625, %v396
        %v630 = vmul.f32 %v626, %v397
        %v631 = vmul.f32 %v627, %v398
        %v632 = vadd.f32 %v628, %v629
        %v633 = vadd.f32 %v632, %v630
        %v634 = vadd.f32 %v633, %v631
        %v635 = vrot.slane %v634, 4
        %v636 = vadd.f32 %v634, %v635
        %v637 = vrot.slane %v636, 2
        %v638 = vadd.f32 %v636, %v637
        %v639 = vrot.slane %v638, 1
        %v640 = vadd.f32 %v638, %v639
        %v641 = vmul.f32 %v640, 0.03125
        %v642 = vsub.f32 %v628, %v641
        %v643 = vsub.f32 %v629, %v641
        %v644 = vsub.f32 %v630, %v641
        %v645 = vsub.f32 %v631, %v641
        %v646 = vmul.f32 %v642, %v642
        %v647 = vmul.f32 %v643, %v643
        %v648 = vmul.f32 %v644, %v644
        %v649 = vmul.f32 %v645, %v645
        %v650 = vmul.f32 %v646, %v395
        %v651 = vmul.f32 %v647, %v396
        %v652 = vmul.f32 %v648, %v397
        %v653 = vmul.f32 %v649, %v398
        %v654 = vadd.f32 %v650, %v651
        %v655 = vadd.f32 %v654, %v652
        %v656 = vadd.f32 %v655, %v653
        %v657 = vrot.slane %v656, 4
        %v658 = vadd.f32 %v656, %v657
        %v659 = vrot.slane %v658, 2
        %v660 = vadd.f32 %v658, %v659
        %v661 = vrot.slane %v660, 1
        %v662 = vadd.f32 %v660, %v661
        %v663 = vmul.f32 %v662, 0.03125
        %v664 = vld [vmem:[%s4] sm:$0x1]
        %v665 = vadd.f32 %v663, 1e-05
        %v666 = vrsqrt.pop %v665
        %v667 = vmul.f32 %v642, %v666
        %v668 = vmul.f32 %v643, %v666
        %v669 = vmul.f32 %v644, %v666
        %v670 = vmul.f32 %v645, %v666
        %v672 = vlaneseq
        %v673 = vshrl.u32 %v672, 7
        %v674 = vsub.s32 0, %v673
        %v675 = vrot.slane %v664, %v674
        %v677 = vmul.f32 %v675, %v667
        %v678 = vmul.f32 %v675, %v668
        %v679 = vmul.f32 %v675, %v669
        %v680 = vmul.f32 %v675, %v670
        %v681 = vld [vmem:[%s5] sm:$0x1]
        %v683 = vlaneseq
        %v684 = vshrl.u32 %v683, 7
        %v685 = vsub.s32 0, %v684
        %v686 = vrot.slane %v681, %v685
        %v688 = vadd.f32 %v677, %v686
        %v689 = vadd.f32 %v678, %v686
        %v690 = vadd.f32 %v679, %v686
        %v691 = vadd.f32 %v680, %v686
        %vm692 = vcmp.ge.f32.partialorder %v688, 0.0
        %vm693 = vcmp.ge.f32.partialorder %v689, 0.0
        %vm694 = vcmp.ge.f32.partialorder %v690, 0.0
        %vm695 = vcmp.ge.f32.partialorder %v691, 0.0
        %v696 = vld [vmem:[%s7] sm:$0x1]
        %v698 = vlaneseq
        %v699 = vshrl.u32 %v698, 7
        %v700 = vsub.s32 0, %v699
        %v701 = vrot.slane %v696, %v700
        %v703 = vmul.f32 %v701, %v688
        %v704 = vmul.f32 %v701, %v689
        %v705 = vmul.f32 %v701, %v690
        %v706 = vmul.f32 %v701, %v691
        %v707 = vsel %vm692, %v688, %v703
        %v708 = vsel %vm693, %v689, %v704
        %v709 = vsel %vm694, %v690, %v705
        %v710 = vsel %vm695, %v691, %v706
        %v711 = vmul.f32 %v707, %v395
        %v712 = vmul.f32 %v708, %v396
        %v713 = vmul.f32 %v709, %v397
        %v714 = vmul.f32 %v710, %v398
        %s715 = scalar_lea.vmem [#allocation7], 128
        %v716 = vld [vmem:[%s715] sm:$0xff]
        %v717 = vld [vmem:[%s715 + $0x8] sm:$0xff]
        %v718 = vld [vmem:[%s715 + $0x10] sm:$0xff]
        %v719 = vld [vmem:[%s715 + $0x18] sm:$0xff]
        %v720 = vld [vmem:[%s715 + $0x20] sm:$0xff]
        %v721 = vld [vmem:[%s715 + $0x28] sm:$0xff]
        %v722 = vld [vmem:[%s715 + $0x30] sm:$0xff]
        %v723 = vld [vmem:[%s715 + $0x38] sm:$0xff]
        %v724 = vld [vmem:[%s715 + $0x40] sm:$0xff]
        %v725 = vld [vmem:[%s715 + $0x48] sm:$0xff]
        %v726 = vld [vmem:[%s715 + $0x50] sm:$0xff]
        %v727 = vld [vmem:[%s715 + $0x58] sm:$0xff]
        %v728 = vld [vmem:[%s715 + $0x60] sm:$0xff]
        %v729 = vld [vmem:[%s715 + $0x68] sm:$0xff]
        %v730 = vld [vmem:[%s715 + $0x70] sm:$0xff]
        %v731 = vld [vmem:[%s715 + $0x78] sm:$0xff]
        %732 = vmatprep.subr.mxu0 0.0
        %733 = vmatpush1.msra.mxu0 %v716
        %734 = vmatprep.subr.mxu0 0.0
        %735 = vmatpush1.msra.mxu0 %v717
        %736 = vmatprep.subr.mxu0 0.0
        %737 = vmatpush1.msra.mxu0 %v718
        %738 = vmatprep.subr.mxu0 0.0
        %739 = vmatpush1.msra.mxu0 %v719
        %740 = vmatprep.subr.mxu0 0.0
        %741 = vmatpush1.msra.mxu0 %v720
        %742 = vmatprep.subr.mxu0 0.0
        %743 = vmatpush1.msra.mxu0 %v721
        %744 = vmatprep.subr.mxu0 0.0
        %745 = vmatpush1.msra.mxu0 %v722
        %746 = vmatprep.subr.mxu0 0.0
        %747 = vmatpush1.msra.mxu0 %v723
        %748 = vmatprep.subr.mxu0 0.0
        %749 = vmatpush1.msra.mxu0 %v724
        %750 = vmatprep.subr.mxu0 0.0
        %751 = vmatpush1.msra.mxu0 %v725
        %752 = vmatprep.subr.mxu0 0.0
        %753 = vmatpush1.msra.mxu0 %v726
        %754 = vmatprep.subr.mxu0 0.0
        %755 = vmatpush1.msra.mxu0 %v727
        %756 = vmatprep.subr.mxu0 0.0
        %757 = vmatpush1.msra.mxu0 %v728
        %758 = vmatprep.subr.mxu0 0.0
        %759 = vmatpush1.msra.mxu0 %v729
        %760 = vmatprep.subr.mxu0 0.0
        %761 = vmatpush1.msra.mxu0 %v730
        %762 = vmatprep.subr.mxu0 0.0
        %763 = vmatpush1.msra.mxu0 %v731
        %764 = vmatprep.subr.mxu0 0.0
        %765 = vmatpush1.msra.mxu0 0.0
        %766 = vmatprep.subr.mxu0 0.0
        %767 = vmatpush1.msra.mxu0 0.0
        %768 = vmatprep.subr.mxu0 0.0
        %769 = vmatpush1.msra.mxu0 0.0
        %770 = vmatprep.subr.mxu0 0.0
        %771 = vmatpush1.msra.mxu0 0.0
        %772 = vmatprep.subr.mxu0 0.0
        %773 = vmatpush1.msra.mxu0 0.0
        %774 = vmatprep.subr.mxu0 0.0
        %775 = vmatpush1.msra.mxu0 0.0
        %776 = vmatprep.subr.mxu0 0.0
        %777 = vmatpush1.msra.mxu0 0.0
        %778 = vmatprep.subr.mxu0 0.0
        %779 = vmatpush1.msra.mxu0 0.0
        %780 = vmatprep.subr.mxu0 0.0
        %781 = vmatpush1.msra.mxu0 0.0
        %782 = vmatprep.subr.mxu0 0.0
        %783 = vmatpush1.msra.mxu0 0.0
        %784 = vmatprep.subr.mxu0 0.0
        %785 = vmatpush1.msra.mxu0 0.0
        %786 = vmatprep.subr.mxu0 0.0
        %787 = vmatpush1.msra.mxu0 0.0
        %788 = vmatprep.subr.mxu0 0.0
        %789 = vmatpush1.msra.mxu0 0.0
        %790 = vmatprep.subr.mxu0 0.0
        %791 = vmatpush1.msra.mxu0 0.0
        %792 = vmatprep.subr.mxu0 0.0
        %793 = vmatpush1.msra.mxu0 0.0
        %794 = vmatprep.subr.mxu0 0.0
        %795 = vmatpush1.msra.mxu0 0.0
        %796 = vmatprep.mubr.f32.mxu0 0.0
        %797 = vmatmul.mubr.f32.gmra.mrb[0].mxu0 %v711
        %v798 = vpop.f32.mrb[0].mxu0
        %v799 = vadd.f32 0.0, %v798
        %v800 = vpop.f32.mrb[0].mxu0
        %801 = vmatprep.mubr.f32.mxu0 0.0
        %802 = vmatmul.mubr.f32.gmra.mrb[0].mxu0 %v712
        %v803 = vpop.f32.mrb[0].mxu0
        %v804 = vadd.f32 0.0, %v803
        %v805 = vpop.f32.mrb[0].mxu0
        %806 = vmatprep.mubr.f32.mxu0 0.0
        %807 = vmatmul.mubr.f32.gmra.mrb[0].mxu0 %v713
        %v808 = vpop.f32.mrb[0].mxu0
        %v809 = vadd.f32 0.0, %v808
        %v810 = vpop.f32.mrb[0].mxu0
        %811 = vmatprep.mubr.f32.mxu0 0.0
        %812 = vmatmul.mubr.f32.gmra.mrb[0].mxu0 %v714
        %v813 = vpop.f32.mrb[0].mxu0
        %v814 = vadd.f32 0.0, %v813
        %v815 = vpop.f32.mrb[0].mxu0
        %816 = vdwg.mxu0
        %s817 = scalar_lea.vmem %s3, 1
        %v818 = vld [vmem:[%s817] sm:$0x1]
        %v820 = vlaneseq
        %v821 = vshrl.u32 %v820, 7
        %v822 = vsub.s32 0, %v821
        %v823 = vrot.slane %v818, %v822
        %825 = vmatprep.subr.mxu0 0.0
        %826 = vmatpush1.msra.mxu0 %v799
        %827 = vmatprep.subr.mxu0 0.0
        %828 = vmatpush1.msra.mxu0 %v804
        %829 = vmatprep.subr.mxu0 0.0
        %830 = vmatpush1.msra.mxu0 %v809
        %831 = vmatprep.subr.mxu0 0.0
        %832 = vmatpush1.msra.mxu0 %v814
        %833 = vmatprep.subr.mxu0 0.0
        %834 = vmatpush1.msra.mxu0 0.0
        %835 = vmatprep.subr.mxu0 0.0
        %836 = vmatpush1.msra.mxu0 0.0
        %837 = vmatprep.subr.mxu0 0.0
        %838 = vmatpush1.msra.mxu0 0.0
        %839 = vmatprep.subr.mxu0 0.0
        %840 = vmatpush1.msra.mxu0 0.0
        %841 = vmatprep.subr.mxu0 0.0
        %842 = vmatpush1.msra.mxu0 0.0
        %843 = vmatprep.subr.mxu0 0.0
        %844 = vmatpush1.msra.mxu0 0.0
        %845 = vmatprep.subr.mxu0 0.0
        %846 = vmatpush1.msra.mxu0 0.0
        %847 = vmatprep.subr.mxu0 0.0
        %848 = vmatpush1.msra.mxu0 0.0
        %849 = vmatprep.subr.mxu0 0.0
        %850 = vmatpush1.msra.mxu0 0.0
        %851 = vmatprep.subr.mxu0 0.0
        %852 = vmatpush1.msra.mxu0 0.0
        %853 = vmatprep.subr.mxu0 0.0
        %854 = vmatpush1.msra.mxu0 0.0
        %855 = vmatprep.subr.mxu0 0.0
        %856 = vmatpush1.msra.mxu0 0.0
        %857 = vmatprep.subr.mxu0 0.0
        %858 = vmatpush1.msra.mxu0 0.0
        %859 = vmatprep.subr.mxu0 0.0
        %860 = vmatpush1.msra.mxu0 0.0
        %861 = vmatprep.subr.mxu0 0.0
        %862 = vmatpush1.msra.mxu0 0.0
        %863 = vmatprep.subr.mxu0 0.0
        %864 = vmatpush1.msra.mxu0 0.0
        %865 = vmatprep.subr.mxu0 0.0
        %866 = vmatpush1.msra.mxu0 0.0
        %867 = vmatprep.subr.mxu0 0.0
        %868 = vmatpush1.msra.mxu0 0.0
        %869 = vmatprep.subr.mxu0 0.0
        %870 = vmatpush1.msra.mxu0 0.0
        %871 = vmatprep.subr.mxu0 0.0
        %872 = vmatpush1.msra.mxu0 0.0
        %873 = vmatprep.subr.mxu0 0.0
        %874 = vmatpush1.msra.mxu0 0.0
        %875 = vmatprep.subr.mxu0 0.0
        %876 = vmatpush1.msra.mxu0 0.0
        %877 = vmatprep.subr.mxu0 0.0
        %878 = vmatpush1.msra.mxu0 0.0
        %879 = vmatprep.subr.mxu0 0.0
        %880 = vmatpush1.msra.mxu0 0.0
        %881 = vmatprep.subr.mxu0 0.0
        %882 = vmatpush1.msra.mxu0 0.0
        %883 = vmatprep.subr.mxu0 0.0
        %884 = vmatpush1.msra.mxu0 0.0
        %885 = vmatprep.subr.mxu0 0.0
        %886 = vmatpush1.msra.mxu0 0.0
        %887 = vmatprep.subr.mxu0 0.0
        %888 = vmatpush1.msra.mxu0 0.0
        %889 = vmatprep.mubr.f32.mxu0 0.0
        %890 = vmatmul.mubr.f32.gmra.mrb[0].mxu0 %v513
        %v891 = vpop.f32.mrb[0].mxu0
        %v892 = vadd.f32 %v823, %v891
        %v893 = vpop.f32.mrb[0].mxu0
        %894 = vmatprep.mubr.f32.mxu0 0.0
        %895 = vmatmul.mubr.f32.gmra.mrb[0].mxu0 %v516
        %v896 = vpop.f32.mrb[0].mxu0
        %v897 = vadd.f32 %v823, %v896
        %v898 = vpop.f32.mrb[0].mxu0
        %899 = vmatprep.mubr.f32.mxu0 0.0
        %900 = vmatmul.mubr.f32.gmra.mrb[0].mxu0 %v519
        %v901 = vpop.f32.mrb[0].mxu0
        %v902 = vadd.f32 %v823, %v901
        %v903 = vpop.f32.mrb[0].mxu0
        %904 = vmatprep.mubr.f32.mxu0 0.0
        %905 = vmatmul.mubr.f32.gmra.mrb[0].mxu0 %v522
        %v906 = vpop.f32.mrb[0].mxu0
        %v907 = vadd.f32 %v823, %v906
        %v908 = vpop.f32.mrb[0].mxu0
        %909 = vdwg.mxu0
        %vm910 = vcmp.ge.f32.partialorder %v892, 0.0
        %vm911 = vcmp.ge.f32.partialorder %v897, 0.0
        %vm912 = vcmp.ge.f32.partialorder %v902, 0.0
        %vm913 = vcmp.ge.f32.partialorder %v907, 0.0
        %s914 = scalar_lea.vmem %s6, 1
        %v915 = vld [vmem:[%s914] sm:$0x1]
        %v917 = vlaneseq
        %v918 = vshrl.u32 %v917, 7
        %v919 = vsub.s32 0, %v918
        %v920 = vrot.slane %v915, %v919
        %v922 = vmul.f32 %v920, %v892
        %v923 = vmul.f32 %v920, %v897
        %v924 = vmul.f32 %v920, %v902
        %v925 = vmul.f32 %v920, %v907
        %v926 = vsel %vm910, %v892, %v922
        %v927 = vsel %vm911, %v897, %v923
        %v928 = vsel %vm912, %v902, %v924
        %v929 = vsel %vm913, %v907, %v925
        %v930 = vmul.f32 %v926, %v395
        %v931 = vmul.f32 %v927, %v396
        %v932 = vmul.f32 %v928, %v397
        %v933 = vmul.f32 %v929, %v398
        %v934 = vadd.f32 %v930, %v931
        %v935 = vadd.f32 %v934, %v932
        %v936 = vadd.f32 %v935, %v933
        %v937 = vrot.slane %v936, 4
        %v938 = vadd.f32 %v936, %v937
        %v939 = vrot.slane %v938, 2
        %v940 = vadd.f32 %v938, %v939
        %v941 = vrot.slane %v940, 1
        %v942 = vadd.f32 %v940, %v941
        %v943 = vmul.f32 %v942, 0.03125
        %v944 = vsub.f32 %v930, %v943
        %v945 = vsub.f32 %v931, %v943
        %v946 = vsub.f32 %v932, %v943
        %v947 = vsub.f32 %v933, %v943
        %v948 = vmul.f32 %v944, %v944
        %v949 = vmul.f32 %v945, %v945
        %v950 = vmul.f32 %v946, %v946
        %v951 = vmul.f32 %v947, %v947
        %v952 = vmul.f32 %v948, %v395
        %v953 = vmul.f32 %v949, %v396
        %v954 = vmul.f32 %v950, %v397
        %v955 = vmul.f32 %v951, %v398
        %v956 = vadd.f32 %v952, %v953
        %v957 = vadd.f32 %v956, %v954
        %v958 = vadd.f32 %v957, %v955
        %v959 = vrot.slane %v958, 4
        %v960 = vadd.f32 %v958, %v959
        %v961 = vrot.slane %v960, 2
        %v962 = vadd.f32 %v960, %v961
        %v963 = vrot.slane %v962, 1
        %v964 = vadd.f32 %v962, %v963
        %v965 = vmul.f32 %v964, 0.03125
        %s966 = scalar_lea.vmem %s4, 1
        %v967 = vld [vmem:[%s966] sm:$0x1]
        %v968 = vadd.f32 %v965, 1e-05
        %v969 = vrsqrt.pop %v968
        %v970 = vmul.f32 %v944, %v969
        %v971 = vmul.f32 %v945, %v969
        %v972 = vmul.f32 %v946, %v969
        %v973 = vmul.f32 %v947, %v969
        %v975 = vlaneseq
        %v976 = vshrl.u32 %v975, 7
        %v977 = vsub.s32 0, %v976
        %v978 = vrot.slane %v967, %v977
        %v980 = vmul.f32 %v978, %v970
        %v981 = vmul.f32 %v978, %v971
        %v982 = vmul.f32 %v978, %v972
        %v983 = vmul.f32 %v978, %v973
        %s984 = scalar_lea.vmem %s5, 1
        %v985 = vld [vmem:[%s984] sm:$0x1]
        %v987 = vlaneseq
        %v988 = vshrl.u32 %v987, 7
        %v989 = vsub.s32 0, %v988
        %v990 = vrot.slane %v985, %v989
        %v992 = vadd.f32 %v980, %v990
        %v993 = vadd.f32 %v981, %v990
        %v994 = vadd.f32 %v982, %v990
        %v995 = vadd.f32 %v983, %v990
        %vm996 = vcmp.ge.f32.partialorder %v992, 0.0
        %vm997 = vcmp.ge.f32.partialorder %v993, 0.0
        %vm998 = vcmp.ge.f32.partialorder %v994, 0.0
        %vm999 = vcmp.ge.f32.partialorder %v995, 0.0
        %s1000 = scalar_lea.vmem %s7, 1
        %v1001 = vld [vmem:[%s1000] sm:$0x1]
        %v1003 = vlaneseq
        %v1004 = vshrl.u32 %v1003, 7
        %v1005 = vsub.s32 0, %v1004
        %v1006 = vrot.slane %v1001, %v1005
        %v1008 = vmul.f32 %v1006, %v992
        %v1009 = vmul.f32 %v1006, %v993
        %v1010 = vmul.f32 %v1006, %v994
        %v1011 = vmul.f32 %v1006, %v995
        %v1012 = vsel %vm996, %v992, %v1008
        %v1013 = vsel %vm997, %v993, %v1009
        %v1014 = vsel %vm998, %v994, %v1010
        %v1015 = vsel %vm999, %v995, %v1011
        %v1016 = vmul.f32 %v1012, %v395
        %v1017 = vmul.f32 %v1013, %v396
        %v1018 = vmul.f32 %v1014, %v397
        %v1019 = vmul.f32 %v1015, %v398
        %v1020 = vmul.f32 %v1016, %v1016
        %v1021 = vmul.f32 %v1017, %v1017
        %v1022 = vmul.f32 %v1018, %v1018
        %v1023 = vmul.f32 %v1019, %v1019
        %1024 = vadd.xlane.f32.xlu0 %v1020
        %v1025 = vpop.xlane.xlu0 %1024
        %1026 = vadd.xlane.f32.xlu0 %v1021
        %v1027 = vpop.xlane.xlu0 %1026
        %1028 = vadd.xlane.f32.xlu0 %v1022
        %v1029 = vpop.xlane.xlu0 %1028
        %1030 = vadd.xlane.f32.xlu0 %v1023
        %v1031 = vpop.xlane.xlu0 %1030
        %v1032 = vrsqrt.pop %v1025
        %v1033 = vmul.f32 %v1025, %v1032
        %vm1034 = vcmp.eq.f32.partialorder %v1025, inf
        %v1035 = vsel %vm1034, %v1025, %v1033
        %vm1036 = vcmp.eq.f32.partialorder %v1025, 0.0
        %v1037 = vand.u32 %v1025, 2147483648
        %v1038 = vsel %vm1036, %v1037, %v1035
        %v1039 = vrsqrt.pop %v1027
        %v1040 = vmul.f32 %v1027, %v1039
        %vm1041 = vcmp.eq.f32.partialorder %v1027, inf
        %v1042 = vsel %vm1041, %v1027, %v1040
        %vm1043 = vcmp.eq.f32.partialorder %v1027, 0.0
        %v1044 = vand.u32 %v1027, 2147483648
        %v1045 = vsel %vm1043, %v1044, %v1042
        %v1046 = vrsqrt.pop %v1029
        %v1047 = vmul.f32 %v1029, %v1046
        %vm1048 = vcmp.eq.f32.partialorder %v1029, inf
        %v1049 = vsel %vm1048, %v1029, %v1047
        %vm1050 = vcmp.eq.f32.partialorder %v1029, 0.0
        %v1051 = vand.u32 %v1029, 2147483648
        %v1052 = vsel %vm1050, %v1051, %v1049
        %v1053 = vrsqrt.pop %v1031
        %v1054 = vmul.f32 %v1031, %v1053
        %vm1055 = vcmp.eq.f32.partialorder %v1031, inf
        %v1056 = vsel %vm1055, %v1031, %v1054
        %vm1057 = vcmp.eq.f32.partialorder %v1031, 0.0
        %v1058 = vand.u32 %v1031, 2147483648
        %v1059 = vsel %vm1057, %v1058, %v1056
        %v1060 = vmax.f32 %v1038, 1e-12
        %v1061 = vmax.f32 %v1045, 1e-12
        %v1062 = vmax.f32 %v1052, 1e-12
        %v1063 = vmax.f32 %v1059, 1e-12
        %v1064 = vrcp.pop %v1060
        %v1065 = vmul.f32 %v1016, %v1064
        %v1066 = vrcp.pop %v1061
        %v1067 = vmul.f32 %v1017, %v1066
        %v1068 = vrcp.pop %v1062
        %v1069 = vmul.f32 %v1018, %v1068
        %v1070 = vrcp.pop %v1063
        %v1071 = vmul.f32 %v1019, %v1070
        %1072 = vst [vmem:[%s377] sm:$0xff] %v1065
        %1073 = vst [vmem:[%s377 + $0x8] sm:$0xff] %v1067
        %1074 = vst [vmem:[%s377 + $0x10] sm:$0xff] %v1069
        %1075 = vst [vmem:[%s377 + $0x18] sm:$0xff] %v1071
        %s1076 = sand.u32 %s214, 1
        %s1077 = scalar_lea.sflag [#allocation4], %s1076
        %s1078 = sand.u32 %s214, 1
        %s1079 = smul.addr %s1078, 32
        %s1080 = scalar_lea.vmem [#allocation8], %s1079
        // Predicated region
        $region65: #{tpu_custom_call.1} parent=51 // pred_check
          %p1081 = pneg %p224
        $region66: #{tpu_custom_call.1} parent=51 // pred_check_branch
          %1083 = sbr.rel (%p1081) target = $region68
        $region67: #{tpu_custom_call.1} parent=51 // pred_region
          %s1085 = ssub.s32 512, 512
          %1086 = vsyncadd %s1077, %s1085
          %s1087 = smul.addr %s28, 4
          %s1088 = smul.addr %s1087, 128
          %s1089 = scalar_lea.hbm %s8, %s1088
          %s1090 = sshll.u32 %s1080, 4
          %s1091 = int_to_ptr.vmem [resolvable:$true] %s1090
          %1096 = dma.vmem_to_hbm [thread:$0]  %s1091, 512, %s1089, %s1077, 128, 128, 8
        $region68: #{tpu_custom_call.1} parent=51 // pred_fallthru
          _
      $region52: #{tpu_custom_call.1} parent=5 // pred_fallthru
        _
      %p1097 = scmp.le.s32.totalorder 2, %s23
      // Predicated region
      $region69: #{tpu_custom_call.1} parent=5 // pred_check
        %p1098 = pneg %p1097
      $region70: #{tpu_custom_call.1} parent=5 // pred_check_branch
        %1100 = sbr.rel (%p1098) target = $region72
      $region71: #{tpu_custom_call.1} parent=5 // pred_region
        %s1101 = ssub.s32 %s23, 2
        // Predicated region
        $region73: #{tpu_custom_call.1} parent=71 // pred_check
          %p1102 = pneg %p230
        $region74: #{tpu_custom_call.1} parent=71 // pred_check_branch
          %1104 = sbr.rel (%p1102) target = $region76
        $region75: #{tpu_custom_call.1} parent=71 // pred_region
          %s1105 = sand.u32 %s215, 1
          %s1106 = scalar_lea.sflag [#allocation4], %s1105
          %s1107 = sand.u32 %s215, 1
          %s1108 = smul.addr %s1107, 32
          %s1109 = scalar_lea.vmem [#allocation8], %s1108
          %1110 = dma.done %s1106, 512
        $region76: #{tpu_custom_call.1} parent=71 // pred_fallthru
          _
      $region72: #{tpu_custom_call.1} parent=5 // pred_fallthru
        _
    $region6: #{tpu_custom_call.1} parent=1 // loop_footer
      %s27 = sadd.s32 1, %s23
    $region7: #{tpu_custom_call.1} parent=1 // loop_footer_branch
      %22 = sbr.rel target = $region3
    $region8: #{tpu_custom_call.1} parent=1 // loop_exit
      _
    %1111 = vsyncpa [#allocation3], 1
    %s1112 = scalar_lea.sflag [#allocation3], 1
    %1113 = vsyncpa %s1112, 1
    %1114 = vsyncpa [#allocation6], 1
    %s1115 = scalar_lea.sflag [#allocation6], 1
    %1116 = vsyncpa %s1115, 1
    %1117 = vsyncpa [#allocation4], 1
    %s1118 = scalar_lea.sflag [#allocation4], 1
    %1119 = vsyncpa %s1118, 1

</llo_original>
